<compile_context>
chip_gen: v6e
topology: v6e:2x2x1
jax: 0.10.0
libtpu: 0.0.40
codegen_flags: <defaults>
</compile_context>

<pallas_src>
import jax
import jax.numpy as jnp
from jax.experimental import pallas as pl
from jax.experimental.pallas import tpu as pltpu

ZSIZE = 20
HSIZE = 4
BASEH = 4
RESOLUTION = 1
HIDDEN = 256
OUT = BASEH * RESOLUTION   # 4
DEFAULT_TM = 256           # batch tile: one full MXU-row pass per layer (v6e/v7x)


def _mlp_kernel(zn_ref, hv_ref, w1n_ref, w1h_ref, b1_ref,
                w2_ref, b2_ref, w3_ref, b3_ref, o_ref):
    # Fused 3-layer MLP on one (TM, .) batch tile.  cat([noise, h_v]) @ W1 is
    # expressed as two dots against the row-split W1 (rows [:20] and [20:]).
    h1 = (jnp.dot(zn_ref[...], w1n_ref[...], preferred_element_type=jnp.float32)
          + jnp.dot(hv_ref[...], w1h_ref[...], preferred_element_type=jnp.float32)
          + b1_ref[...])
    h1 = jnp.maximum(h1, 0.0)                                     # ReLU (f32 VPU)
    h2 = jnp.dot(h1, w2_ref[...], preferred_element_type=jnp.float32) + b2_ref[...]
    h2 = jnp.maximum(h2, 0.0)                                     # ReLU
    out = jnp.dot(h2, w3_ref[...], preferred_element_type=jnp.float32) + b3_ref[...]
    o_ref[...] = out.astype(o_ref.dtype)                          # (TM, 4)


def spawnnet_forward_batched(noise, h_v, params, *, tm=DEFAULT_TM):
    """noise: (B, zsize), h_v: (B, hsize) -> (B, baseh, resolution)."""
    w1n, w1h, b1, w2, b2, w3, b3 = params
    B = noise.shape[0]

    if B <= tm:
        # One tile covering the whole (possibly tiny, non-multiple-of-8) batch;
        # full-extent blocks are exempt from the (8,128) divisibility rule.
        tm_eff, padded_b = B, B
    else:
        tm_eff = tm
        padded_b = pl.cdiv(B, tm) * tm
        pad = padded_b - B
        if pad:
            noise = jnp.pad(noise, ((0, pad), (0, 0)))
            h_v = jnp.pad(h_v, ((0, pad), (0, 0)))

    grid = (padded_b // tm_eff,)
    const = lambda i: (0, 0)        # weights/biases stay VMEM-resident across steps

    out = pl.pallas_call(
        _mlp_kernel,
        out_shape=jax.ShapeDtypeStruct((padded_b, OUT), jnp.float32),
        grid=grid,
        in_specs=[
            pl.BlockSpec((tm_eff, ZSIZE), lambda i: (i, 0)),   # noise tile
            pl.BlockSpec((tm_eff, HSIZE), lambda i: (i, 0)),   # h_v tile
            pl.BlockSpec((ZSIZE, HIDDEN), const),              # W1 rows for noise
            pl.BlockSpec((HSIZE, HIDDEN), const),              # W1 rows for h_v
            pl.BlockSpec((1, HIDDEN), const),                  # b1
            pl.BlockSpec((HIDDEN, HIDDEN), const),             # W2
            pl.BlockSpec((1, HIDDEN), const),                  # b2
            pl.BlockSpec((HIDDEN, OUT), const),                # W3
            pl.BlockSpec((1, OUT), const),                     # b3
        ],
        out_specs=pl.BlockSpec((tm_eff, OUT), lambda i: (i, 0)),
        compiler_params=pltpu.CompilerParams(
            dimension_semantics=("parallel",)),   # shard batch across TCs on v7x
    )(noise, h_v, w1n, w1h, b1, w2, b2, w3, b3)

    return out[:B].reshape(B, BASEH, RESOLUTION)


def spawnnet_forward(noise, h_v, params):
    """Single-sample module semantics: (zsize,), (hsize,) -> (baseh, resolution)."""
    out = spawnnet_forward_batched(noise.reshape(1, ZSIZE),
                                   h_v.reshape(1, HSIZE), params)
    return out[0]                      # == x.view(baseh, resolution)


def init_params(key):
    """nn.Linear-style init U(-1/sqrt(din), 1/sqrt(din)); weights stored (din, dout).

    W1 is stored pre-split into its noise rows (first ZSIZE) and h_v rows
    (last HSIZE), matching the [noise, h_v] concat order of the module, so the
    kernel call needs no per-call slicing/concatenation ops.
    """
    def linear(key, din, dout):
        kw, kb = jax.random.split(key)
        bound = 1.0 / jnp.sqrt(jnp.float32(din))
        w = jax.random.uniform(kw, (din, dout), jnp.float32, -bound, bound)
        b = jax.random.uniform(kb, (1, dout), jnp.float32, -bound, bound)
        return w, b

    k1, k2, k3 = jax.random.split(key, 3)
    w1, b1 = linear(k1, ZSIZE + HSIZE, HIDDEN)
    w2, b2 = linear(k2, HIDDEN, HIDDEN)
    w3, b3 = linear(k3, HIDDEN, OUT)
    return (w1[:ZSIZE], w1[ZSIZE:], b1, w2, b2, w3, b3)


def _reference(noise2d, hv2d, params):
    w1n, w1h, b1, w2, b2, w3, b3 = params
    x = jnp.concatenate([noise2d, hv2d], -1)
    w1 = jnp.concatenate([w1n, w1h], 0)
    h = jnp.maximum(x @ w1 + b1, 0.0)
    h = jnp.maximum(h @ w2 + b2, 0.0)
    return h @ w3 + b3


if __name__ == "__main__":
    key = jax.random.PRNGKey(0)
    k_params, k_noise, k_h, k_bn, k_bh = jax.random.split(key, 5)

    params = init_params(k_params)

    # --- single-sample path (exact module semantics) ------------------------
    noise = jax.random.uniform(k_noise, (ZSIZE,), jnp.float32)   # init_noise()
    h_v = jax.random.uniform(k_h, (HSIZE,), jnp.float32)
    out1 = jax.block_until_ready(spawnnet_forward(noise, h_v, params))
    assert out1.shape == (BASEH, RESOLUTION), out1.shape
    ref1 = _reference(noise.reshape(1, -1), h_v.reshape(1, -1), params)
    assert jnp.allclose(out1, ref1.reshape(BASEH, RESOLUTION), atol=1e-4, rtol=1e-5)

    # --- batched path (grid of two 256-row MXU tiles) ------------------------
    B = 512
    noise_b = jax.random.uniform(k_bn, (B, ZSIZE), jnp.float32)
    h_v_b = jax.random.uniform(k_bh, (B, HSIZE), jnp.float32)
    out_b = jax.block_until_ready(spawnnet_forward_batched(noise_b, h_v_b, params))
    assert out_b.shape == (B, BASEH, RESOLUTION), out_b.shape
    ref_b = _reference(noise_b, h_v_b, params).reshape(B, BASEH, RESOLUTION)
    assert jnp.allclose(out_b, ref_b, atol=1e-4, rtol=1e-5)

    print("KERNEL_OK")
</pallas_src>

<mosaic_0001>
module attributes {stable_mosaic.version = 11 : i64} {
  func.func @_mlp_kernel(%arg0: i32, %arg1: memref<1x20xf32, #tpu.memory_space<vmem>>, %arg2: memref<1x4xf32, #tpu.memory_space<vmem>>, %arg3: memref<20x256xf32, #tpu.memory_space<vmem>>, %arg4: memref<4x256xf32, #tpu.memory_space<vmem>>, %arg5: memref<1x256xf32, #tpu.memory_space<vmem>>, %arg6: memref<256x256xf32, #tpu.memory_space<vmem>>, %arg7: memref<1x256xf32, #tpu.memory_space<vmem>>, %arg8: memref<256x4xf32, #tpu.memory_space<vmem>>, %arg9: memref<1x4xf32, #tpu.memory_space<vmem>>, %arg10: memref<1x4xf32, #tpu.memory_space<vmem>>) attributes {dimension_semantics = [#tpu.dimension_semantics<parallel>], iteration_bounds = array<i64: 1>, scalar_prefetch = 0 : i64, scratch_operands = 0 : i64, tpu.core_type = #tpu.core_type<tc>, window_params = [{transform_indices = @transform_0, window_bounds = array<i64: 1, 20>}, {transform_indices = @transform_1, window_bounds = array<i64: 1, 4>}, {pipeline_mode = #tpu.pipeline_mode<synchronous>, transform_indices = @transform_2, window_bounds = array<i64: 20, 256>}, {pipeline_mode = #tpu.pipeline_mode<synchronous>, transform_indices = @transform_3, window_bounds = array<i64: 4, 256>}, {pipeline_mode = #tpu.pipeline_mode<synchronous>, transform_indices = @transform_4, window_bounds = array<i64: 1, 256>}, {pipeline_mode = #tpu.pipeline_mode<synchronous>, transform_indices = @transform_5, window_bounds = array<i64: 256, 256>}, {pipeline_mode = #tpu.pipeline_mode<synchronous>, transform_indices = @transform_6, window_bounds = array<i64: 1, 256>}, {pipeline_mode = #tpu.pipeline_mode<synchronous>, transform_indices = @transform_7, window_bounds = array<i64: 256, 4>}, {pipeline_mode = #tpu.pipeline_mode<synchronous>, transform_indices = @transform_8, window_bounds = array<i64: 1, 4>}, {transform_indices = @transform_9, window_bounds = array<i64: 1, 4>}]} {
    %c0 = arith.constant 0 : index
    %c0_0 = arith.constant 0 : index
    %0 = vector.load %arg1[%c0, %c0_0] : memref<1x20xf32, #tpu.memory_space<vmem>>, vector<1x20xf32>
    %c0_1 = arith.constant 0 : index
    %c0_2 = arith.constant 0 : index
    %1 = vector.load %arg3[%c0_1, %c0_2] : memref<20x256xf32, #tpu.memory_space<vmem>>, vector<20x256xf32>
    %cst = arith.constant dense<0.000000e+00> : vector<1x256xf32>
    %2 = tpu.matmul %0, %1, %cst {dimension_numbers = #tpu.dot_dimension_numbers<[1], [0], [0], [1], [0, 0, 1, 1], [], []>} : vector<1x20xf32>, vector<20x256xf32>, vector<1x256xf32> -> vector<1x256xf32>
    %c0_3 = arith.constant 0 : index
    %c0_4 = arith.constant 0 : index
    %3 = vector.load %arg2[%c0_3, %c0_4] : memref<1x4xf32, #tpu.memory_space<vmem>>, vector<1x4xf32>
    %c0_5 = arith.constant 0 : index
    %c0_6 = arith.constant 0 : index
    %4 = vector.load %arg4[%c0_5, %c0_6] : memref<4x256xf32, #tpu.memory_space<vmem>>, vector<4x256xf32>
    %cst_7 = arith.constant dense<0.000000e+00> : vector<1x256xf32>
    %5 = tpu.matmul %3, %4, %cst_7 {dimension_numbers = #tpu.dot_dimension_numbers<[1], [0], [0], [1], [0, 0, 1, 1], [], []>} : vector<1x4xf32>, vector<4x256xf32>, vector<1x256xf32> -> vector<1x256xf32>
    %6 = arith.addf %2, %5 : vector<1x256xf32>
    %c0_8 = arith.constant 0 : index
    %c0_9 = arith.constant 0 : index
    %7 = vector.load %arg5[%c0_8, %c0_9] : memref<1x256xf32, #tpu.memory_space<vmem>>, vector<1x256xf32>
    %8 = arith.addf %6, %7 : vector<1x256xf32>
    %cst_10 = arith.constant 0.000000e+00 : f32
    %9 = vector.broadcast %cst_10 : f32 to vector<1x256xf32>
    %10 = arith.maximumf %8, %9 : vector<1x256xf32>
    %c0_11 = arith.constant 0 : index
    %c0_12 = arith.constant 0 : index
    %11 = vector.load %arg6[%c0_11, %c0_12] : memref<256x256xf32, #tpu.memory_space<vmem>>, vector<256x256xf32>
    %cst_13 = arith.constant dense<0.000000e+00> : vector<1x256xf32>
    %12 = tpu.matmul %10, %11, %cst_13 {dimension_numbers = #tpu.dot_dimension_numbers<[1], [0], [0], [1], [0, 0, 1, 1], [], []>} : vector<1x256xf32>, vector<256x256xf32>, vector<1x256xf32> -> vector<1x256xf32>
    %c0_14 = arith.constant 0 : index
    %c0_15 = arith.constant 0 : index
    %13 = vector.load %arg7[%c0_14, %c0_15] : memref<1x256xf32, #tpu.memory_space<vmem>>, vector<1x256xf32>
    %14 = arith.addf %12, %13 : vector<1x256xf32>
    %cst_16 = arith.constant 0.000000e+00 : f32
    %15 = vector.broadcast %cst_16 : f32 to vector<1x256xf32>
    %16 = arith.maximumf %14, %15 : vector<1x256xf32>
    %c0_17 = arith.constant 0 : index
    %c0_18 = arith.constant 0 : index
    %17 = vector.load %arg8[%c0_17, %c0_18] : memref<256x4xf32, #tpu.memory_space<vmem>>, vector<256x4xf32>
    %cst_19 = arith.constant dense<0.000000e+00> : vector<1x4xf32>
    %18 = tpu.matmul %16, %17, %cst_19 {dimension_numbers = #tpu.dot_dimension_numbers<[1], [0], [0], [1], [0, 0, 1, 1], [], []>} : vector<1x256xf32>, vector<256x4xf32>, vector<1x4xf32> -> vector<1x4xf32>
    %c0_20 = arith.constant 0 : index
    %c0_21 = arith.constant 0 : index
    %19 = vector.load %arg9[%c0_20, %c0_21] : memref<1x4xf32, #tpu.memory_space<vmem>>, vector<1x4xf32>
    %20 = arith.addf %18, %19 : vector<1x4xf32>
    %c0_22 = arith.constant 0 : index
    %c0_23 = arith.constant 0 : index
    %21 = vector.load %arg10[%c0_22, %c0_23] : memref<1x4xf32, #tpu.memory_space<vmem>>, vector<1x4xf32>
    tpu.vector_store %arg10[%c0_22, %c0_23], %20 {strides = array<i32>} : memref<1x4xf32, #tpu.memory_space<vmem>>, vector<1x4xf32>,
    return
  }
  func.func @transform_0(%arg0: i32) -> (i32, i32) {
    %c0_i32 = arith.constant 0 : i32
    %c0_i32_0 = arith.constant 0 : i32
    return %arg0, %c0_i32 : i32, i32
  }
  func.func @transform_1(%arg0: i32) -> (i32, i32) {
    %c0_i32 = arith.constant 0 : i32
    %c0_i32_0 = arith.constant 0 : i32
    return %arg0, %c0_i32 : i32, i32
  }
  func.func @transform_2(%arg0: i32) -> (i32, i32) {
    %c0_i32 = arith.constant 0 : i32
    %c0_i32_0 = arith.constant 0 : i32
    %c0_i32_1 = arith.constant 0 : i32
    return %c0_i32, %c0_i32_0 : i32, i32
  }
  func.func @transform_3(%arg0: i32) -> (i32, i32) {
    %c0_i32 = arith.constant 0 : i32
    %c0_i32_0 = arith.constant 0 : i32
    %c0_i32_1 = arith.constant 0 : i32
    return %c0_i32, %c0_i32_0 : i32, i32
  }
  func.func @transform_4(%arg0: i32) -> (i32, i32) {
    %c0_i32 = arith.constant 0 : i32
    %c0_i32_0 = arith.constant 0 : i32
    %c0_i32_1 = arith.constant 0 : i32
    return %c0_i32, %c0_i32_0 : i32, i32
  }
  func.func @transform_5(%arg0: i32) -> (i32, i32) {
    %c0_i32 = arith.constant 0 : i32
    %c0_i32_0 = arith.constant 0 : i32
    %c0_i32_1 = arith.constant 0 : i32
    return %c0_i32, %c0_i32_0 : i32, i32
  }
  func.func @transform_6(%arg0: i32) -> (i32, i32) {
    %c0_i32 = arith.constant 0 : i32
    %c0_i32_0 = arith.constant 0 : i32
    %c0_i32_1 = arith.constant 0 : i32
    return %c0_i32, %c0_i32_0 : i32, i32
  }
  func.func @transform_7(%arg0: i32) -> (i32, i32) {
    %c0_i32 = arith.constant 0 : i32
    %c0_i32_0 = arith.constant 0 : i32
    %c0_i32_1 = arith.constant 0 : i32
    return %c0_i32, %c0_i32_0 : i32, i32
  }
  func.func @transform_8(%arg0: i32) -> (i32, i32) {
    %c0_i32 = arith.constant 0 : i32
    %c0_i32_0 = arith.constant 0 : i32
    %c0_i32_1 = arith.constant 0 : i32
    return %c0_i32, %c0_i32_0 : i32, i32
  }
  func.func @transform_9(%arg0: i32) -> (i32, i32) {
    %c0_i32 = arith.constant 0 : i32
    %c0_i32_0 = arith.constant 0 : i32
    return %arg0, %c0_i32 : i32, i32
  }
}

</mosaic_0001>

<llo_original>
// kernel: tpu_custom_call.1
$region0: #{tpu_custom_call.1}
  #allocation0 [shape = 'u32[]', space=smem, size = 0x4, offset = 0x4, fixed_abs, tag = 'smem constant byte address 0x4 - core index']
  #allocation1 [shape = 'u32[144,128]{1,0:T(1,128)}', space=vmem, size = 0x12000, scoped, tag = 'internal scratch']
  %s0 = inlined_call_operand.vmem [shape: f32[1,20], index: 0, kind: input, shape index: {}]
  %s1 = inlined_call_operand.vmem [shape: f32[1,4], index: 1, kind: input, shape index: {}]
  %s2 = inlined_call_operand.vmem [shape: f32[20,256], index: 2, kind: input, shape index: {}]
  %s3 = inlined_call_operand.vmem [shape: f32[4,256], index: 3, kind: input, shape index: {}]
  %s4 = inlined_call_operand.vmem [shape: f32[1,256], index: 4, kind: input, shape index: {}]
  %s5 = inlined_call_operand.hbm [shape: f32[256,256], index: 5, kind: input, shape index: {}]
  %s6 = inlined_call_operand.vmem [shape: f32[1,256], index: 6, kind: input, shape index: {}]
  %s7 = inlined_call_operand.vmem [shape: f32[256,4], index: 7, kind: input, shape index: {}]
  %s8 = inlined_call_operand.vmem [shape: f32[1,4], index: 8, kind: input, shape index: {}]
  %s9 = inlined_call_operand.hbm [shape: f32[1,4], index: 9, kind: output, shape index: {}]
  %s10 = sld [smem:[#allocation0]]
  $region50: #{tpu_custom_call.1} parent=0
    _
  %s12 = ssub.s32 1, %s10
  %s13 = scalar_select 0, %s12, %s10
  $region1: #{tpu_custom_call.1} parent=0
    #allocation2 [shape = 'u8[262144]{0}', space=vmem, size = 0x40000, scoped, tag = 'input window, operand 5, single buffered']
    #allocation3 [shape = 's32[1]{0}', space=sflag, size = 0x4, scoped, tag = 'scoped memory for tpu_custom_call.1']
    #allocation4 [shape = 's32[1]{0}', space=sflag, size = 0x4, scoped, tag = 'scoped memory for tpu_custom_call.1']
    #allocation5 [shape = 'u8[512]{0}', space=vmem, size = 0x400, scoped, tag = 'output window, operand 0, single buffered']
    %14 = vsyncpa [#allocation3], 0
    %15 = vsyncpa [#allocation4], 0
    // Predicated region
    $region2: #{tpu_custom_call.1} parent=1 // pred_check
      _
    $region3: #{tpu_custom_call.1} parent=1 // pred_check_branch
      %17 = sbr.rel (0) target = $region5
    $region4: #{tpu_custom_call.1} parent=1 // pred_region
      _
    $region5: #{tpu_custom_call.1} parent=1 // pred_fallthru
      _
    // Predicated region
    $region6: #{tpu_custom_call.1} parent=1 // pred_check
      _
    $region7: #{tpu_custom_call.1} parent=1 // pred_check_branch
      %19 = sbr.rel (0) target = $region9
    $region8: #{tpu_custom_call.1} parent=1 // pred_region
      _
    $region9: #{tpu_custom_call.1} parent=1 // pred_fallthru
      _
    // Predicated region
    $region10: #{tpu_custom_call.1} parent=1 // pred_check
      _
    $region11: #{tpu_custom_call.1} parent=1 // pred_check_branch
      %21 = sbr.rel (0) target = $region13
    $region12: #{tpu_custom_call.1} parent=1 // pred_region
      _
    $region13: #{tpu_custom_call.1} parent=1 // pred_fallthru
      _
    // Predicated region
    $region14: #{tpu_custom_call.1} parent=1 // pred_check
      _
    $region15: #{tpu_custom_call.1} parent=1 // pred_check_branch
      %23 = sbr.rel (0) target = $region17
    $region16: #{tpu_custom_call.1} parent=1 // pred_region
      _
    $region17: #{tpu_custom_call.1} parent=1 // pred_fallthru
      _
    // Predicated region
    $region18: #{tpu_custom_call.1} parent=1 // pred_check
      _
    $region19: #{tpu_custom_call.1} parent=1 // pred_check_branch
      %25 = sbr.rel (0) target = $region21
    $region20: #{tpu_custom_call.1} parent=1 // pred_region
      _
    $region21: #{tpu_custom_call.1} parent=1 // pred_fallthru
      _
    // Predicated region
    $region22: #{tpu_custom_call.1} parent=1 // pred_check
      _
    $region23: #{tpu_custom_call.1} parent=1 // pred_check_branch
      %27 = sbr.rel (0) target = $region25
    $region24: #{tpu_custom_call.1} parent=1 // pred_region
      %s29 = ssub.s32 8192, 8192
      %30 = vsyncadd [#allocation3], %s29
      %s31 = sshll.u32 [#allocation2], 4
      %s32 = int_to_ptr.vmem [resolvable:$true] %s31
      %37 = dma.hbm_to_vmem [thread:$0]  %s5, 8192, %s32, [#allocation3], 256, 256, 16
    $region25: #{tpu_custom_call.1} parent=1 // pred_fallthru
      _
    // Predicated region
    $region26: #{tpu_custom_call.1} parent=1 // pred_check
      _
    $region27: #{tpu_custom_call.1} parent=1 // pred_check_branch
      %39 = sbr.rel (0) target = $region29
    $region28: #{tpu_custom_call.1} parent=1 // pred_region
      _
    $region29: #{tpu_custom_call.1} parent=1 // pred_fallthru
      _
    // Predicated region
    $region30: #{tpu_custom_call.1} parent=1 // pred_check
      _
    $region31: #{tpu_custom_call.1} parent=1 // pred_check_branch
      %41 = sbr.rel (0) target = $region33
    $region32: #{tpu_custom_call.1} parent=1 // pred_region
      _
    $region33: #{tpu_custom_call.1} parent=1 // pred_fallthru
      _
    // Predicated region
    $region34: #{tpu_custom_call.1} parent=1 // pred_check
      _
    $region35: #{tpu_custom_call.1} parent=1 // pred_check_branch
      %43 = sbr.rel (0) target = $region37
    $region36: #{tpu_custom_call.1} parent=1 // pred_region
      _
    $region37: #{tpu_custom_call.1} parent=1 // pred_fallthru
      _
    // Predicated region
    $region38: #{tpu_custom_call.1} parent=1 // pred_check
      _
    $region39: #{tpu_custom_call.1} parent=1 // pred_check_branch
      %45 = sbr.rel (0) target = $region41
    $region40: #{tpu_custom_call.1} parent=1 // pred_region
      %46 = dma.done [#allocation3], 8192
    $region41: #{tpu_custom_call.1} parent=1 // pred_fallthru
      _
    %v47 = vld [vmem:[%s0] sm:$0x1]
    %v48 = vld [vmem:[%s2] sm:$0xff]
    %v49 = vld [vmem:[%s2 + $0x8] sm:$0xff]
    %v50 = vld [vmem:[%s2 + $0x10] sm:$0xff]
    %v51 = vld [vmem:[%s2 + $0x18] sm:$0xff]
    %v52 = vld [vmem:[%s2 + $0x20] sm:$0xf]
    %v53 = vld [vmem:[%s2 + $0x28] sm:$0xf]
    %v54 = vld [vmem:[%s1] sm:$0x1]
    %v55 = vld [vmem:[%s3] sm:$0xff]
    %v57 = vcombine.high %v55, %v55
    %vm58 = vcmask 31744
    %v60 = vsel %vm58, %v54, 0
    %vm62 = vcmask 1043456
    %v63 = vsel %vm62, %v55, 0
    %v65 = vsel %vm62, %v57, 0
    %67 = vmatprep.subr.mxu0 0.0
    %68 = vmatpush1.msra.mxu0 0.0
    %69 = vmatprep.subr.mxu0 0.0
    %70 = vmatpush1.msra.mxu0 0.0
    %71 = vmatprep.subr.mxu0 0.0
    %72 = vmatpush1.msra.mxu0 0.0
    %73 = vmatprep.subr.mxu0 0.0
    %74 = vmatpush1.msra.mxu0 0.0
    %75 = vmatprep.subr.mxu0 0.0
    %76 = vmatpush1.msra.mxu0 0.0
    %77 = vmatprep.subr.mxu0 0.0
    %78 = vmatpush1.msra.mxu0 0.0
    %79 = vmatprep.subr.mxu0 0.0
    %80 = vmatpush1.msra.mxu0 0.0
    %81 = vmatprep.subr.mxu0 0.0
    %82 = vmatpush1.msra.mxu0 0.0
    %83 = vmatprep.subr.mxu0 0.0
    %84 = vmatpush1.msra.mxu0 0.0
    %85 = vmatprep.subr.mxu0 0.0
    %86 = vmatpush1.msra.mxu0 0.0
    %87 = vmatprep.subr.mxu0 0.0
    %88 = vmatpush1.msra.mxu0 0.0
    %89 = vmatprep.subr.mxu0 0.0
    %90 = vmatpush1.msra.mxu0 0.0
    %91 = vmatprep.subr.mxu0 0.0
    %92 = vmatpush1.msra.mxu0 0.0
    %93 = vmatprep.subr.mxu0 0.0
    %94 = vmatpush1.msra.mxu0 0.0
    %95 = vmatprep.subr.mxu0 0.0
    %96 = vmatpush1.msra.mxu0 0.0
    %97 = vmatprep.subr.mxu0 %v65
    %98 = vmatpush1.msra.mxu0 %v63
    %99 = vmatprep.subr.mxu0 0.0
    %100 = vmatpush2.msra.mxu0 0.0
    %101 = vmatprep.subr.mxu0 0.0
    %102 = vmatpush2.msra.mxu0 0.0
    %103 = vmatprep.subr.mxu0 0.0
    %104 = vmatpush2.msra.mxu0 0.0
    %105 = vmatprep.subr.mxu0 0.0
    %106 = vmatpush2.msra.mxu0 0.0
    %107 = vmatprep.subr.mxu0 0.0
    %108 = vmatpush2.msra.mxu0 0.0
    %109 = vmatprep.subr.mxu0 0.0
    %110 = vmatpush2.msra.mxu0 0.0
    %111 = vmatprep.subr.mxu0 0.0
    %112 = vmatpush2.msra.mxu0 0.0
    %113 = vmatprep.subr.mxu0 0.0
    %114 = vmatpush2.msra.mxu0 0.0
    %115 = vmatprep.subr.mxu0 0.0
    %116 = vmatpush2.msra.mxu0 0.0
    %117 = vmatprep.subr.mxu0 0.0
    %118 = vmatpush2.msra.mxu0 0.0
    %119 = vmatprep.subr.mxu0 0.0
    %120 = vmatpush2.msra.mxu0 0.0
    %121 = vmatprep.subr.mxu0 0.0
    %122 = vmatpush2.msra.mxu0 0.0
    %123 = vmatprep.subr.mxu0 0.0
    %124 = vmatpush2.msra.mxu0 0.0
    %125 = vmatprep.subr.mxu0 0.0
    %126 = vmatpush2.msra.mxu0 0.0
    %127 = vmatprep.subr.mxu0 0.0
    %128 = vmatpush2.msra.mxu0 0.0
    %129 = vmatprep.subr.mxu0 0.0
    %130 = vmatpush2.msra.mxu0 0.0
    %131 = vmatprep.mubr.f32.mxu0 0.0
    %132 = vmatmul.mubr.f32.gmra.mxu0 %v60
    %v133 = vpop.f32.mrf.mxu0
    %v134 = vadd.f32 0.0, %v133
    %v135 = vpop.f32.mrf.mxu0
    %v136 = vadd.f32 0.0, %v135
    %137 = vdwg.mxu0
    %vm138 = vcmask 162816
    %v140 = vsel %vm138, %v47, 0
    %v143 = vsel %vm62, %v52, 0
    %v146 = vsel %vm62, %v53, 0
    %148 = vmatprep.subr.mxu0 0.0
    %149 = vmatpush1.msra.mxu0 0.0
    %150 = vmatprep.subr.mxu0 0.0
    %151 = vmatpush1.msra.mxu0 0.0
    %152 = vmatprep.subr.mxu0 0.0
    %153 = vmatpush1.msra.mxu0 0.0
    %154 = vmatprep.subr.mxu0 0.0
    %155 = vmatpush1.msra.mxu0 0.0
    %156 = vmatprep.subr.mxu0 0.0
    %157 = vmatpush1.msra.mxu0 0.0
    %158 = vmatprep.subr.mxu0 0.0
    %159 = vmatpush1.msra.mxu0 0.0
    %160 = vmatprep.subr.mxu0 0.0
    %161 = vmatpush1.msra.mxu0 0.0
    %162 = vmatprep.subr.mxu0 0.0
    %163 = vmatpush1.msra.mxu0 0.0
    %164 = vmatprep.subr.mxu0 0.0
    %165 = vmatpush1.msra.mxu0 0.0
    %166 = vmatprep.subr.mxu0 0.0
    %167 = vmatpush1.msra.mxu0 0.0
    %168 = vmatprep.subr.mxu0 0.0
    %169 = vmatpush1.msra.mxu0 0.0
    %170 = vmatprep.subr.mxu0 0.0
    %171 = vmatpush1.msra.mxu0 0.0
    %172 = vmatprep.subr.mxu0 0.0
    %173 = vmatpush1.msra.mxu0 0.0
    %174 = vmatprep.subr.mxu0 %v146
    %175 = vmatpush1.msra.mxu0 %v143
    %176 = vmatprep.subr.mxu0 %v51
    %177 = vmatpush1.msra.mxu0 %v50
    %178 = vmatprep.subr.mxu0 %v49
    %179 = vmatpush1.msra.mxu0 %v48
    %180 = vmatprep.subr.mxu0 0.0
    %181 = vmatpush2.msra.mxu0 0.0
    %182 = vmatprep.subr.mxu0 0.0
    %183 = vmatpush2.msra.mxu0 0.0
    %184 = vmatprep.subr.mxu0 0.0
    %185 = vmatpush2.msra.mxu0 0.0
    %186 = vmatprep.subr.mxu0 0.0
    %187 = vmatpush2.msra.mxu0 0.0
    %188 = vmatprep.subr.mxu0 0.0
    %189 = vmatpush2.msra.mxu0 0.0
    %190 = vmatprep.subr.mxu0 0.0
    %191 = vmatpush2.msra.mxu0 0.0
    %192 = vmatprep.subr.mxu0 0.0
    %193 = vmatpush2.msra.mxu0 0.0
    %194 = vmatprep.subr.mxu0 0.0
    %195 = vmatpush2.msra.mxu0 0.0
    %196 = vmatprep.subr.mxu0 0.0
    %197 = vmatpush2.msra.mxu0 0.0
    %198 = vmatprep.subr.mxu0 0.0
    %199 = vmatpush2.msra.mxu0 0.0
    %200 = vmatprep.subr.mxu0 0.0
    %201 = vmatpush2.msra.mxu0 0.0
    %202 = vmatprep.subr.mxu0 0.0
    %203 = vmatpush2.msra.mxu0 0.0
    %204 = vmatprep.subr.mxu0 0.0
    %205 = vmatpush2.msra.mxu0 0.0
    %206 = vmatprep.subr.mxu0 0.0
    %207 = vmatpush2.msra.mxu0 0.0
    %208 = vmatprep.subr.mxu0 0.0
    %209 = vmatpush2.msra.mxu0 0.0
    %210 = vmatprep.subr.mxu0 0.0
    %211 = vmatpush2.msra.mxu0 0.0
    %212 = vmatprep.mubr.f32.mxu0 0.0
    %213 = vmatmul.mubr.f32.gmra.mxu0 %v140
    %v214 = vpop.f32.mrf.mxu0
    %v215 = vadd.f32 %v134, %v214
    %v216 = vpop.f32.mrf.mxu0
    %v217 = vadd.f32 %v136, %v216
    %218 = vdwg.mxu0
    %v219 = vld [vmem:[%s4] sm:$0x3]
    %v221 = vlaneseq
    %v222 = vshrl.u32 %v221, 7
    %v223 = vsub.s32 0, %v222
    %v224 = vrot.slane %v219, %v223
    %v225 = vlaneseq
    %v226 = vshrl.u32 %v225, 7
    %v227 = vsub.s32 1, %v226
    %v228 = vrot.slane %v219, %v227
    %v231 = vadd.f32 %v215, %v224
    %v232 = vadd.f32 %v217, %v228
    %v233 = vmax.f32 %v231, 0.0
    %v234 = vmax.f32 %v232, 0.0
    %v235 = vld [vmem:[#allocation2] sm:$0xff]
    %v236 = vld [vmem:[#allocation2 + $0x8] sm:$0xff]
    %v237 = vld [vmem:[#allocation2 + $0x10] sm:$0xff]
    %v238 = vld [vmem:[#allocation2 + $0x18] sm:$0xff]
    %v239 = vld [vmem:[#allocation2 + $0x20] sm:$0xff]
    %v240 = vld [vmem:[#allocation2 + $0x28] sm:$0xff]
    %v241 = vld [vmem:[#allocation2 + $0x30] sm:$0xff]
    %v242 = vld [vmem:[#allocation2 + $0x38] sm:$0xff]
    %v243 = vld [vmem:[#allocation2 + $0x40] sm:$0xff]
    %v244 = vld [vmem:[#allocation2 + $0x48] sm:$0xff]
    %v245 = vld [vmem:[#allocation2 + $0x50] sm:$0xff]
    %v246 = vld [vmem:[#allocation2 + $0x58] sm:$0xff]
    %v247 = vld [vmem:[#allocation2 + $0x60] sm:$0xff]
    %v248 = vld [vmem:[#allocation2 + $0x68] sm:$0xff]
    %v249 = vld [vmem:[#allocation2 + $0x70] sm:$0xff]
    %v250 = vld [vmem:[#allocation2 + $0x78] sm:$0xff]
    %v251 = vld [vmem:[#allocation2 + $0x80] sm:$0xff]
    %v252 = vld [vmem:[#allocation2 + $0x88] sm:$0xff]
    %v253 = vld [vmem:[#allocation2 + $0x90] sm:$0xff]
    %v254 = vld [vmem:[#allocation2 + $0x98] sm:$0xff]
    %v255 = vld [vmem:[#allocation2 + $0xa0] sm:$0xff]
    %v256 = vld [vmem:[#allocation2 + $0xa8] sm:$0xff]
    %v257 = vld [vmem:[#allocation2 + $0xb0] sm:$0xff]
    %v258 = vld [vmem:[#allocation2 + $0xb8] sm:$0xff]
    %v259 = vld [vmem:[#allocation2 + $0xc0] sm:$0xff]
    %v260 = vld [vmem:[#allocation2 + $0xc8] sm:$0xff]
    %v261 = vld [vmem:[#allocation2 + $0xd0] sm:$0xff]
    %v262 = vld [vmem:[#allocation2 + $0xd8] sm:$0xff]
    %v263 = vld [vmem:[#allocation2 + $0xe0] sm:$0xff]
    %v264 = vld [vmem:[#allocation2 + $0xe8] sm:$0xff]
    %v265 = vld [vmem:[#allocation2 + $0xf0] sm:$0xff]
    %v266 = vld [vmem:[#allocation2 + $0xf8] sm:$0xff]
    %v267 = vld [vmem:[#allocation2 + $0x100] sm:$0xff]
    %v268 = vld [vmem:[#allocation2 + $0x108] sm:$0xff]
    %v269 = vld [vmem:[#allocation2 + $0x110] sm:$0xff]
    %v270 = vld [vmem:[#allocation2 + $0x118] sm:$0xff]
    %v271 = vld [vmem:[#allocation2 + $0x120] sm:$0xff]
    %v272 = vld [vmem:[#allocation2 + $0x128] sm:$0xff]
    %v273 = vld [vmem:[#allocation2 + $0x130] sm:$0xff]
    %v274 = vld [vmem:[#allocation2 + $0x138] sm:$0xff]
    %v275 = vld [vmem:[#allocation2 + $0x140] sm:$0xff]
    %v276 = vld [vmem:[#allocation2 + $0x148] sm:$0xff]
    %v277 = vld [vmem:[#allocation2 + $0x150] sm:$0xff]
    %v278 = vld [vmem:[#allocation2 + $0x158] sm:$0xff]
    %v279 = vld [vmem:[#allocation2 + $0x160] sm:$0xff]
    %v280 = vld [vmem:[#allocation2 + $0x168] sm:$0xff]
    %v281 = vld [vmem:[#allocation2 + $0x170] sm:$0xff]
    %v282 = vld [vmem:[#allocation2 + $0x178] sm:$0xff]
    %v283 = vld [vmem:[#allocation2 + $0x180] sm:$0xff]
    %v284 = vld [vmem:[#allocation2 + $0x188] sm:$0xff]
    %v285 = vld [vmem:[#allocation2 + $0x190] sm:$0xff]
    %v286 = vld [vmem:[#allocation2 + $0x198] sm:$0xff]
    %v287 = vld [vmem:[#allocation2 + $0x1a0] sm:$0xff]
    %v288 = vld [vmem:[#allocation2 + $0x1a8] sm:$0xff]
    %v289 = vld [vmem:[#allocation2 + $0x1b0] sm:$0xff]
    %v290 = vld [vmem:[#allocation2 + $0x1b8] sm:$0xff]
    %v291 = vld [vmem:[#allocation2 + $0x1c0] sm:$0xff]
    %v292 = vld [vmem:[#allocation2 + $0x1c8] sm:$0xff]
    %v293 = vld [vmem:[#allocation2 + $0x1d0] sm:$0xff]
    %v294 = vld [vmem:[#allocation2 + $0x1d8] sm:$0xff]
    %v295 = vld [vmem:[#allocation2 + $0x1e0] sm:$0xff]
    %v296 = vld [vmem:[#allocation2 + $0x1e8] sm:$0xff]
    %v297 = vld [vmem:[#allocation2 + $0x1f0] sm:$0xff]
    %v298 = vld [vmem:[#allocation2 + $0x1f8] sm:$0xff]
    %v299 = vld [vmem:[%s6] sm:$0x3]
    %v301 = vlaneseq
    %v302 = vshrl.u32 %v301, 7
    %v303 = vsub.s32 0, %v302
    %v304 = vrot.slane %v299, %v303
    %v305 = vlaneseq
    %v306 = vshrl.u32 %v305, 7
    %v307 = vsub.s32 1, %v306
    %v308 = vrot.slane %v299, %v307
    %311 = vmatprep.subr.mxu0 %v266
    %312 = vmatpush1.msra.mxu0 %v265
    %313 = vmatprep.subr.mxu0 %v264
    %314 = vmatpush1.msra.mxu0 %v263
    %315 = vmatprep.subr.mxu0 %v262
    %316 = vmatpush1.msra.mxu0 %v261
    %317 = vmatprep.subr.mxu0 %v260
    %318 = vmatpush1.msra.mxu0 %v259
    %319 = vmatprep.subr.mxu0 %v258
    %320 = vmatpush1.msra.mxu0 %v257
    %321 = vmatprep.subr.mxu0 %v256
    %322 = vmatpush1.msra.mxu0 %v255
    %323 = vmatprep.subr.mxu0 %v254
    %324 = vmatpush1.msra.mxu0 %v253
    %325 = vmatprep.subr.mxu0 %v252
    %326 = vmatpush1.msra.mxu0 %v251
    %327 = vmatprep.subr.mxu0 %v250
    %328 = vmatpush1.msra.mxu0 %v249
    %329 = vmatprep.subr.mxu0 %v248
    %330 = vmatpush1.msra.mxu0 %v247
    %331 = vmatprep.subr.mxu0 %v246
    %332 = vmatpush1.msra.mxu0 %v245
    %333 = vmatprep.subr.mxu0 %v244
    %334 = vmatpush1.msra.mxu0 %v243
    %335 = vmatprep.subr.mxu0 %v242
    %336 = vmatpush1.msra.mxu0 %v241
    %337 = vmatprep.subr.mxu0 %v240
    %338 = vmatpush1.msra.mxu0 %v239
    %339 = vmatprep.subr.mxu0 %v238
    %340 = vmatpush1.msra.mxu0 %v237
    %341 = vmatprep.subr.mxu0 %v236
    %342 = vmatpush1.msra.mxu0 %v235
    %343 = vmatprep.subr.mxu0 %v298
    %344 = vmatpush2.msra.mxu0 %v297
    %345 = vmatprep.subr.mxu0 %v296
    %346 = vmatpush2.msra.mxu0 %v295
    %347 = vmatprep.subr.mxu0 %v294
    %348 = vmatpush2.msra.mxu0 %v293
    %349 = vmatprep.subr.mxu0 %v292
    %350 = vmatpush2.msra.mxu0 %v291
    %351 = vmatprep.subr.mxu0 %v290
    %352 = vmatpush2.msra.mxu0 %v289
    %353 = vmatprep.subr.mxu0 %v288
    %354 = vmatpush2.msra.mxu0 %v287
    %355 = vmatprep.subr.mxu0 %v286
    %356 = vmatpush2.msra.mxu0 %v285
    %357 = vmatprep.subr.mxu0 %v284
    %358 = vmatpush2.msra.mxu0 %v283
    %359 = vmatprep.subr.mxu0 %v282
    %360 = vmatpush2.msra.mxu0 %v281
    %361 = vmatprep.subr.mxu0 %v280
    %362 = vmatpush2.msra.mxu0 %v279
    %363 = vmatprep.subr.mxu0 %v278
    %364 = vmatpush2.msra.mxu0 %v277
    %365 = vmatprep.subr.mxu0 %v276
    %366 = vmatpush2.msra.mxu0 %v275
    %367 = vmatprep.subr.mxu0 %v274
    %368 = vmatpush2.msra.mxu0 %v273
    %369 = vmatprep.subr.mxu0 %v272
    %370 = vmatpush2.msra.mxu0 %v271
    %371 = vmatprep.subr.mxu0 %v270
    %372 = vmatpush2.msra.mxu0 %v269
    %373 = vmatprep.subr.mxu0 %v268
    %374 = vmatpush2.msra.mxu0 %v267
    %375 = vmatprep.mubr.f32.mxu0 %v234
    %376 = vmatmul.mubr.f32.gmra.mxu0 %v233
    %v377 = vpop.f32.mrf.mxu0
    %v378 = vadd.f32 %v304, %v377
    %v379 = vpop.f32.mrf.mxu0
    %v380 = vadd.f32 %v308, %v379
    %381 = vdwg.mxu0
    %v382 = vmax.f32 %v378, 0.0
    %v383 = vmax.f32 %v380, 0.0
    %v384 = vld [vmem:[%s7] sm:$0xff]
    %v385 = vld [vmem:[%s7 + $0x8] sm:$0xff]
    %v386 = vld [vmem:[%s7 + $0x10] sm:$0xff]
    %v387 = vld [vmem:[%s7 + $0x18] sm:$0xff]
    %v388 = vld [vmem:[%s7 + $0x20] sm:$0xff]
    %v389 = vld [vmem:[%s7 + $0x28] sm:$0xff]
    %v390 = vld [vmem:[%s7 + $0x30] sm:$0xff]
    %v391 = vld [vmem:[%s7 + $0x38] sm:$0xff]
    %v392 = vld [vmem:[%s7 + $0x40] sm:$0xff]
    %v393 = vld [vmem:[%s7 + $0x48] sm:$0xff]
    %v394 = vld [vmem:[%s7 + $0x50] sm:$0xff]
    %v395 = vld [vmem:[%s7 + $0x58] sm:$0xff]
    %v396 = vld [vmem:[%s7 + $0x60] sm:$0xff]
    %v397 = vld [vmem:[%s7 + $0x68] sm:$0xff]
    %v398 = vld [vmem:[%s7 + $0x70] sm:$0xff]
    %v399 = vld [vmem:[%s7 + $0x78] sm:$0xff]
    %v400 = vld [vmem:[%s7 + $0x80] sm:$0xff]
    %v401 = vld [vmem:[%s7 + $0x88] sm:$0xff]
    %v402 = vld [vmem:[%s7 + $0x90] sm:$0xff]
    %v403 = vld [vmem:[%s7 + $0x98] sm:$0xff]
    %v404 = vld [vmem:[%s7 + $0xa0] sm:$0xff]
    %v405 = vld [vmem:[%s7 + $0xa8] sm:$0xff]
    %v406 = vld [vmem:[%s7 + $0xb0] sm:$0xff]
    %v407 = vld [vmem:[%s7 + $0xb8] sm:$0xff]
    %v408 = vld [vmem:[%s7 + $0xc0] sm:$0xff]
    %v409 = vld [vmem:[%s7 + $0xc8] sm:$0xff]
    %v410 = vld [vmem:[%s7 + $0xd0] sm:$0xff]
    %v411 = vld [vmem:[%s7 + $0xd8] sm:$0xff]
    %v412 = vld [vmem:[%s7 + $0xe0] sm:$0xff]
    %v413 = vld [vmem:[%s7 + $0xe8] sm:$0xff]
    %v414 = vld [vmem:[%s7 + $0xf0] sm:$0xff]
    %v415 = vld [vmem:[%s7 + $0xf8] sm:$0xff]
    %v416 = vld [vmem:[%s8] sm:$0x1]
    %417 = vmatprep.subr.mxu0 0.0
    %418 = vmatpush1.msra.mxu0 %v399
    %419 = vmatprep.subr.mxu0 0.0
    %420 = vmatpush1.msra.mxu0 %v398
    %421 = vmatprep.subr.mxu0 0.0
    %422 = vmatpush1.msra.mxu0 %v397
    %423 = vmatprep.subr.mxu0 0.0
    %424 = vmatpush1.msra.mxu0 %v396
    %425 = vmatprep.subr.mxu0 0.0
    %426 = vmatpush1.msra.mxu0 %v395
    %427 = vmatprep.subr.mxu0 0.0
    %428 = vmatpush1.msra.mxu0 %v394
    %429 = vmatprep.subr.mxu0 0.0
    %430 = vmatpush1.msra.mxu0 %v393
    %431 = vmatprep.subr.mxu0 0.0
    %432 = vmatpush1.msra.mxu0 %v392
    %433 = vmatprep.subr.mxu0 0.0
    %434 = vmatpush1.msra.mxu0 %v391
    %435 = vmatprep.subr.mxu0 0.0
    %436 = vmatpush1.msra.mxu0 %v390
    %437 = vmatprep.subr.mxu0 0.0
    %438 = vmatpush1.msra.mxu0 %v389
    %439 = vmatprep.subr.mxu0 0.0
    %440 = vmatpush1.msra.mxu0 %v388
    %441 = vmatprep.subr.mxu0 0.0
    %442 = vmatpush1.msra.mxu0 %v387
    %443 = vmatprep.subr.mxu0 0.0
    %444 = vmatpush1.msra.mxu0 %v386
    %445 = vmatprep.subr.mxu0 0.0
    %446 = vmatpush1.msra.mxu0 %v385
    %447 = vmatprep.subr.mxu0 0.0
    %448 = vmatpush1.msra.mxu0 %v384
    %449 = vmatprep.subr.mxu0 0.0
    %450 = vmatpush2.msra.mxu0 %v415
    %451 = vmatprep.subr.mxu0 0.0
    %452 = vmatpush2.msra.mxu0 %v414
    %453 = vmatprep.subr.mxu0 0.0
    %454 = vmatpush2.msra.mxu0 %v413
    %455 = vmatprep.subr.mxu0 0.0
    %456 = vmatpush2.msra.mxu0 %v412
    %457 = vmatprep.subr.mxu0 0.0
    %458 = vmatpush2.msra.mxu0 %v411
    %459 = vmatprep.subr.mxu0 0.0
    %460 = vmatpush2.msra.mxu0 %v410
    %461 = vmatprep.subr.mxu0 0.0
    %462 = vmatpush2.msra.mxu0 %v409
    %463 = vmatprep.subr.mxu0 0.0
    %464 = vmatpush2.msra.mxu0 %v408
    %465 = vmatprep.subr.mxu0 0.0
    %466 = vmatpush2.msra.mxu0 %v407
    %467 = vmatprep.subr.mxu0 0.0
    %468 = vmatpush2.msra.mxu0 %v406
    %469 = vmatprep.subr.mxu0 0.0
    %470 = vmatpush2.msra.mxu0 %v405
    %471 = vmatprep.subr.mxu0 0.0
    %472 = vmatpush2.msra.mxu0 %v404
    %473 = vmatprep.subr.mxu0 0.0
    %474 = vmatpush2.msra.mxu0 %v403
    %475 = vmatprep.subr.mxu0 0.0
    %476 = vmatpush2.msra.mxu0 %v402
    %477 = vmatprep.subr.mxu0 0.0
    %478 = vmatpush2.msra.mxu0 %v401
    %479 = vmatprep.subr.mxu0 0.0
    %480 = vmatpush2.msra.mxu0 %v400
    %481 = vmatprep.mubr.f32.mxu0 %v383
    %482 = vmatmul.mubr.f32.gmra.mxu0 %v382
    %v483 = vpop.f32.mrf.mxu0
    %v484 = vadd.f32 %v416, %v483
    %v485 = vpop.f32.mrf.mxu0
    %486 = vdwg.mxu0
    %vm487 = vcmask 24576
    %488 = vst.msk [vmem:[#allocation5] sm:$0x1] %vm487, %v484
    // Predicated region
    $region42: #{tpu_custom_call.1} parent=1 // pred_check
      _
    $region43: #{tpu_custom_call.1} parent=1 // pred_check_branch
      %490 = sbr.rel (0) target = $region45
    $region44: #{tpu_custom_call.1} parent=1 // pred_region
      %s492 = ssub.s32 16, 16
      %493 = vsyncadd [#allocation4], %s492
      %s495 = sshll.u32 [#allocation5], 4
      %s496 = int_to_ptr.vmem [resolvable:$true] %s495
      %498 = dma.vmem_to_hbm [thread:$0]  %s496, 16, %s9, [#allocation4]
    $region45: #{tpu_custom_call.1} parent=1 // pred_fallthru
      _
    // Predicated region
    $region46: #{tpu_custom_call.1} parent=1 // pred_check
      _
    $region47: #{tpu_custom_call.1} parent=1 // pred_check_branch
      %500 = sbr.rel (0) target = $region49
    $region48: #{tpu_custom_call.1} parent=1 // pred_region
      %501 = dma.done [#allocation4], 16
    $region49: #{tpu_custom_call.1} parent=1 // pred_fallthru
      _
    %502 = vsyncpa [#allocation3], 1
    %503 = vsyncpa [#allocation4], 1

</llo_original>
